<compile_context>
chip_gen: v5e
topology: v5e:2x2
jax: 0.10.0
libtpu: 0.0.40
codegen_flags: <defaults>
</compile_context>

<pallas_src>
import functools

import jax
import jax.numpy as jnp
from jax.experimental import pallas as pl
from jax.experimental.pallas import tpu as pltpu


def _act(x, pred_act):
    if pred_act == "relu":
        return jnp.maximum(x, 0.0)
    elif pred_act == "softplus":
        # PyTorch nn.Softplus default: beta=1, threshold=20
        return jnp.where(x > 20.0, x, jnp.log1p(jnp.exp(jnp.minimum(x, 20.0))))
    else:
        raise ValueError("Undefined activation function")


def _fused_mlp_kernel(x_ref, w0_ref, b0_ref, *rest, num_hidden, pred_act):
    """One grid step == one batch tile through the fully fused multi-head MLP."""
    if num_hidden > 0:
        wh_ref, bh_ref, wo_ref, bo_ref, out_ref = rest
    else:
        wo_ref, bo_ref, out_ref = rest

    # Layer 0: [bm, feat_dim] @ [feat_dim, T*hid] + [1, T*hid]
    h = jnp.dot(x_ref[...], w0_ref[...], preferred_element_type=jnp.float32)
    h = _act(h + b0_ref[...], pred_act)

    # Hidden layers (block-diagonal packed), statically unrolled.
    for l in range(num_hidden):
        h = jnp.dot(h, wh_ref[l], preferred_element_type=jnp.float32)
        h = _act(h + bh_ref[l], pred_act)

    # Output layer (block-diagonal packed): writes final cat(dim=1) layout.
    out = jnp.dot(h, wo_ref[...], preferred_element_type=jnp.float32) + bo_ref[...]
    out_ref[...] = out.astype(out_ref.dtype)


def init_feat_mtl_params(key, feat_dim, num_layer, num_tasks, dtype=jnp.float32):
    """Per-head parameters (shapes follow Feat_MTL.__init__, stored as [in, out])."""
    hid = feat_dim // 2
    out_dim = num_tasks            # each head outputs `num_tasks` values
    num_hidden = num_layer - 1     # extra (hid -> hid) layers per head

    ks = jax.random.split(key, 6)
    w0 = 0.1 * jax.random.normal(ks[0], (num_tasks, feat_dim, hid), dtype)
    b0 = 0.1 * jax.random.normal(ks[1], (num_tasks, 1, hid), dtype)
    wh = 0.1 * jax.random.normal(ks[2], (num_tasks, num_hidden, hid, hid), dtype)
    bh = 0.1 * jax.random.normal(ks[3], (num_tasks, num_hidden, 1, hid), dtype)
    wo = 0.1 * jax.random.normal(ks[4], (num_tasks, hid, out_dim), dtype)
    bo = 0.1 * jax.random.normal(ks[5], (num_tasks, 1, out_dim), dtype)
    return (w0, b0, wh, bh, wo, bo)


def pack_feat_mtl_params(params):
    """Pack per-head params into fused (column-stacked / block-diagonal) form.

    Done once, outside the kernel; the packing preserves the exact per-head
    math (cross-head blocks are zero) and the torch.cat(dim=1) output order.
    """
    w0, b0, wh, bh, wo, bo = params
    T, feat_dim, hid = w0.shape
    num_hidden = wh.shape[1]
    out_dim = wo.shape[-1]
    thid = T * hid
    tout = T * out_dim

    # Layer 0: columns concatenated head-by-head.
    w0p = jnp.transpose(w0, (1, 0, 2)).reshape(feat_dim, thid)
    b0p = b0.reshape(1, thid)

    # Hidden layers: block-diagonal [T*hid, T*hid] per layer.
    if num_hidden > 0:
        whp = jnp.zeros((num_hidden, thid, thid), w0.dtype)
        for t in range(T):
            whp = whp.at[:, t * hid:(t + 1) * hid, t * hid:(t + 1) * hid].set(wh[t])
        bhp = jnp.transpose(bh, (1, 2, 0, 3)).reshape(num_hidden, 1, thid)
    else:
        whp, bhp = None, None

    # Output layer: block-diagonal [T*hid, T*out_dim] -> cat(dim=1) layout.
    wop = jnp.zeros((thid, tout), w0.dtype)
    for t in range(T):
        wop = wop.at[t * hid:(t + 1) * hid, t * out_dim:(t + 1) * out_dim].set(wo[t])
    bop = bo.reshape(1, tout)

    return (w0p, b0p, whp, bhp, wop, bop)


def feat_mtl_forward(x, packed_params, *, pred_act, block_batch=512):
    """Pallas forward: returns [batch, num_tasks * out_dim] like torch.cat(dim=1)."""
    w0p, b0p, whp, bhp, wop, bop = packed_params
    feat_dim, thid = w0p.shape
    tout = wop.shape[1]
    num_hidden = 0 if whp is None else whp.shape[0]
    batch = x.shape[0]

    # Batch tiling: single tile for small batches, 512-row tiles otherwise
    # (weights stay resident across batch tiles; axis is 'parallel').
    bm = batch if batch <= block_batch else block_batch
    grid = (pl.cdiv(batch, bm),)

    in_specs = [
        pl.BlockSpec((bm, feat_dim), lambda i: (i, 0)),        # x (batch-tiled)
        pl.BlockSpec((feat_dim, thid), lambda i: (0, 0)),      # W0 packed
        pl.BlockSpec((1, thid), lambda i: (0, 0)),             # b0 packed
    ]
    args = [x, w0p, b0p]
    if num_hidden > 0:
        in_specs += [
            pl.BlockSpec((num_hidden, thid, thid), lambda i: (0, 0, 0)),  # Wh block-diag
            pl.BlockSpec((num_hidden, 1, thid), lambda i: (0, 0, 0)),     # bh packed
        ]
        args += [whp, bhp]
    in_specs += [
        pl.BlockSpec((thid, tout), lambda i: (0, 0)),          # Wo block-diag
        pl.BlockSpec((1, tout), lambda i: (0, 0)),             # bo packed
    ]
    args += [wop, bop]

    kernel = functools.partial(
        _fused_mlp_kernel, num_hidden=num_hidden, pred_act=pred_act)

    flops = 2 * batch * (feat_dim * thid + num_hidden * thid * thid + thid * tout)
    transcendentals = (
        2 * batch * thid * (num_hidden + 1) if pred_act == "softplus" else 0)
    bytes_accessed = (
        sum(int(a.size) * a.dtype.itemsize for a in args)
        + batch * tout * x.dtype.itemsize)

    out = pl.pallas_call(
        kernel,
        out_shape=jax.ShapeDtypeStruct((batch, tout), x.dtype),
        grid_spec=pltpu.PrefetchScalarGridSpec(
            num_scalar_prefetch=0,
            grid=grid,
            in_specs=in_specs,
            out_specs=pl.BlockSpec((bm, tout), lambda i: (i, 0)),
        ),
        compiler_params=pltpu.CompilerParams(
            dimension_semantics=("parallel",)),
        cost_estimate=pl.CostEstimate(
            flops=flops,
            transcendentals=transcendentals,
            bytes_accessed=bytes_accessed),
    )(*args)
    return out


def feat_mtl_reference(x, params, *, pred_act):
    """Pure-JAX reference mirroring the PyTorch forward (per-head, unpacked)."""
    w0, b0, wh, bh, wo, bo = params
    num_hidden = wh.shape[1]
    outs = []
    for t in range(w0.shape[0]):
        h = _act(x @ w0[t] + b0[t], pred_act)
        for l in range(num_hidden):
            h = _act(h @ wh[t, l] + bh[t, l], pred_act)
        outs.append(h @ wo[t] + bo[t])
    return jnp.concatenate(outs, axis=1)


if __name__ == "__main__":
    # Small, module-consistent shapes.
    batch = 8
    feat_dim = 32
    num_tasks = 3

    key = jax.random.PRNGKey(0)
    k_x, k_p, k_p2 = jax.random.split(key, 3)
    x = jax.random.normal(k_x, (batch, feat_dim), jnp.float32)

    # Case 1: relu, num_layer=2 (one hidden layer per head).
    params = init_feat_mtl_params(k_p, feat_dim, num_layer=2, num_tasks=num_tasks)
    packed = pack_feat_mtl_params(params)
    out = jax.block_until_ready(feat_mtl_forward(x, packed, pred_act="relu"))
    ref = feat_mtl_reference(x, params, pred_act="relu")
    assert out.shape == (batch, num_tasks * num_tasks), out.shape
    assert jnp.allclose(out, ref, atol=1e-5, rtol=1e-5), "relu mismatch vs reference"

    # Case 2: softplus, num_layer=1 (no hidden layers -> wh/bh-free kernel path).
    params1 = init_feat_mtl_params(k_p2, feat_dim, num_layer=1, num_tasks=num_tasks)
    packed1 = pack_feat_mtl_params(params1)
    out1 = jax.block_until_ready(feat_mtl_forward(x, packed1, pred_act="softplus"))
    ref1 = feat_mtl_reference(x, params1, pred_act="softplus")
    assert out1.shape == (batch, num_tasks * num_tasks), out1.shape
    assert jnp.allclose(out1, ref1, atol=1e-5, rtol=1e-5), "softplus mismatch vs reference"

    print("KERNEL_OK")
</pallas_src>

<mosaic_0001>
module attributes {stable_mosaic.version = 11 : i64} {
  func.func @_fused_mlp_kernel(%arg0: i32, %arg1: memref<8x32xf32, #tpu.memory_space<vmem>>, %arg2: memref<32x48xf32, #tpu.memory_space<vmem>>, %arg3: memref<1x48xf32, #tpu.memory_space<vmem>>, %arg4: memref<1x48x48xf32, #tpu.memory_space<vmem>>, %arg5: memref<1x1x48xf32, #tpu.memory_space<vmem>>, %arg6: memref<48x9xf32, #tpu.memory_space<vmem>>, %arg7: memref<1x9xf32, #tpu.memory_space<vmem>>, %arg8: memref<8x9xf32, #tpu.memory_space<vmem>>) attributes {dimension_semantics = [#tpu.dimension_semantics<parallel>], iteration_bounds = array<i64: 1>, scalar_prefetch = 0 : i64, scratch_operands = 0 : i64, tpu.core_type = #tpu.core_type<tc>, window_params = [{transform_indices = @transform_0, window_bounds = array<i64: 8, 32>}, {pipeline_mode = #tpu.pipeline_mode<synchronous>, transform_indices = @transform_1, window_bounds = array<i64: 32, 48>}, {pipeline_mode = #tpu.pipeline_mode<synchronous>, transform_indices = @transform_2, window_bounds = array<i64: 1, 48>}, {pipeline_mode = #tpu.pipeline_mode<synchronous>, transform_indices = @transform_3, window_bounds = array<i64: 1, 48, 48>}, {pipeline_mode = #tpu.pipeline_mode<synchronous>, transform_indices = @transform_4, window_bounds = array<i64: 1, 1, 48>}, {pipeline_mode = #tpu.pipeline_mode<synchronous>, transform_indices = @transform_5, window_bounds = array<i64: 48, 9>}, {pipeline_mode = #tpu.pipeline_mode<synchronous>, transform_indices = @transform_6, window_bounds = array<i64: 1, 9>}, {transform_indices = @transform_7, window_bounds = array<i64: 8, 9>}]} {
    %c0 = arith.constant 0 : index
    %c0_0 = arith.constant 0 : index
    %0 = vector.load %arg1[%c0, %c0_0] : memref<8x32xf32, #tpu.memory_space<vmem>>, vector<8x32xf32>
    %c0_1 = arith.constant 0 : index
    %c0_2 = arith.constant 0 : index
    %1 = vector.load %arg2[%c0_1, %c0_2] : memref<32x48xf32, #tpu.memory_space<vmem>>, vector<32x48xf32>
    %cst = arith.constant dense<0.000000e+00> : vector<8x48xf32>
    %2 = tpu.matmul %0, %1, %cst {dimension_numbers = #tpu.dot_dimension_numbers<[1], [0], [0], [1], [0, 0, 1, 1], [], []>} : vector<8x32xf32>, vector<32x48xf32>, vector<8x48xf32> -> vector<8x48xf32>
    %c0_3 = arith.constant 0 : index
    %c0_4 = arith.constant 0 : index
    %3 = vector.load %arg3[%c0_3, %c0_4] : memref<1x48xf32, #tpu.memory_space<vmem>>, vector<1x48xf32>
    %4 = vector.broadcast %3 : vector<1x48xf32> to vector<8x48xf32>
    %5 = arith.addf %2, %4 : vector<8x48xf32>
    %cst_5 = arith.constant 0.000000e+00 : f32
    %6 = vector.broadcast %cst_5 : f32 to vector<8x48xf32>
    %7 = arith.maximumf %5, %6 : vector<8x48xf32>
    %c0_6 = arith.constant 0 : index
    %c0_7 = arith.constant 0 : index
    %c0_8 = arith.constant 0 : index
    %8 = vector.load %arg4[%c0_6, %c0_7, %c0_8] : memref<1x48x48xf32, #tpu.memory_space<vmem>>, vector<1x48x48xf32>
    %9 = vector.shape_cast %8 : vector<1x48x48xf32> to vector<48x48xf32>
    %cst_9 = arith.constant dense<0.000000e+00> : vector<8x48xf32>
    %10 = tpu.matmul %7, %9, %cst_9 {dimension_numbers = #tpu.dot_dimension_numbers<[1], [0], [0], [1], [0, 0, 1, 1], [], []>} : vector<8x48xf32>, vector<48x48xf32>, vector<8x48xf32> -> vector<8x48xf32>
    %c0_10 = arith.constant 0 : index
    %c0_11 = arith.constant 0 : index
    %c0_12 = arith.constant 0 : index
    %11 = vector.load %arg5[%c0_10, %c0_11, %c0_12] : memref<1x1x48xf32, #tpu.memory_space<vmem>>, vector<1x1x48xf32>
    %12 = vector.shape_cast %11 : vector<1x1x48xf32> to vector<1x48xf32>
    %13 = vector.broadcast %12 : vector<1x48xf32> to vector<8x48xf32>
    %14 = arith.addf %10, %13 : vector<8x48xf32>
    %cst_13 = arith.constant 0.000000e+00 : f32
    %15 = vector.broadcast %cst_13 : f32 to vector<8x48xf32>
    %16 = arith.maximumf %14, %15 : vector<8x48xf32>
    %c0_14 = arith.constant 0 : index
    %c0_15 = arith.constant 0 : index
    %17 = vector.load %arg6[%c0_14, %c0_15] : memref<48x9xf32, #tpu.memory_space<vmem>>, vector<48x9xf32>
    %cst_16 = arith.constant dense<0.000000e+00> : vector<8x9xf32>
    %18 = tpu.matmul %16, %17, %cst_16 {dimension_numbers = #tpu.dot_dimension_numbers<[1], [0], [0], [1], [0, 0, 1, 1], [], []>} : vector<8x48xf32>, vector<48x9xf32>, vector<8x9xf32> -> vector<8x9xf32>
    %c0_17 = arith.constant 0 : index
    %c0_18 = arith.constant 0 : index
    %19 = vector.load %arg7[%c0_17, %c0_18] : memref<1x9xf32, #tpu.memory_space<vmem>>, vector<1x9xf32>
    %20 = vector.broadcast %19 : vector<1x9xf32> to vector<8x9xf32>
    %21 = arith.addf %18, %20 : vector<8x9xf32>
    %c0_19 = arith.constant 0 : index
    %c0_20 = arith.constant 0 : index
    %22 = vector.load %arg8[%c0_19, %c0_20] : memref<8x9xf32, #tpu.memory_space<vmem>>, vector<8x9xf32>
    tpu.vector_store %arg8[%c0_19, %c0_20], %21 {strides = array<i32>} : memref<8x9xf32, #tpu.memory_space<vmem>>, vector<8x9xf32>,
    return
  }
  func.func @transform_0(%arg0: i32) -> (i32, i32) {
    %c0_i32 = arith.constant 0 : i32
    %c0_i32_0 = arith.constant 0 : i32
    return %arg0, %c0_i32 : i32, i32
  }
  func.func @transform_1(%arg0: i32) -> (i32, i32) {
    %c0_i32 = arith.constant 0 : i32
    %c0_i32_0 = arith.constant 0 : i32
    %c0_i32_1 = arith.constant 0 : i32
    return %c0_i32, %c0_i32_0 : i32, i32
  }
  func.func @transform_2(%arg0: i32) -> (i32, i32) {
    %c0_i32 = arith.constant 0 : i32
    %c0_i32_0 = arith.constant 0 : i32
    %c0_i32_1 = arith.constant 0 : i32
    return %c0_i32, %c0_i32_0 : i32, i32
  }
  func.func @transform_3(%arg0: i32) -> (i32, i32, i32) {
    %c0_i32 = arith.constant 0 : i32
    %c0_i32_0 = arith.constant 0 : i32
    %c0_i32_1 = arith.constant 0 : i32
    %c0_i32_2 = arith.constant 0 : i32
    return %c0_i32, %c0_i32_0, %c0_i32_1 : i32, i32, i32
  }
  func.func @transform_4(%arg0: i32) -> (i32, i32, i32) {
    %c0_i32 = arith.constant 0 : i32
    %c0_i32_0 = arith.constant 0 : i32
    %c0_i32_1 = arith.constant 0 : i32
    %c0_i32_2 = arith.constant 0 : i32
    return %c0_i32, %c0_i32_0, %c0_i32_1 : i32, i32, i32
  }
  func.func @transform_5(%arg0: i32) -> (i32, i32) {
    %c0_i32 = arith.constant 0 : i32
    %c0_i32_0 = arith.constant 0 : i32
    %c0_i32_1 = arith.constant 0 : i32
    return %c0_i32, %c0_i32_0 : i32, i32
  }
  func.func @transform_6(%arg0: i32) -> (i32, i32) {
    %c0_i32 = arith.constant 0 : i32
    %c0_i32_0 = arith.constant 0 : i32
    %c0_i32_1 = arith.constant 0 : i32
    return %c0_i32, %c0_i32_0 : i32, i32
  }
  func.func @transform_7(%arg0: i32) -> (i32, i32) {
    %c0_i32 = arith.constant 0 : i32
    %c0_i32_0 = arith.constant 0 : i32
    return %arg0, %c0_i32 : i32, i32
  }
}

</mosaic_0001>

<llo_original>
// kernel: tpu_custom_call.1
$region0: #{tpu_custom_call.1}
  #allocation0 [shape = 'u32[]', space=smem, size = 0x4, offset = 0x4, fixed_abs, tag = 'smem constant byte address 0x4 - core index']
  #allocation1 [shape = 'u32[72,128]{1,0:T(1,128)}', space=vmem, size = 0x9000, scoped, tag = 'internal scratch']
  %s0 = inlined_call_operand.vmem [shape: f32[8,32], index: 0, kind: input, shape index: {}]
  %s1 = inlined_call_operand.hbm [shape: f32[32,48], index: 1, kind: input, shape index: {}]
  %s2 = inlined_call_operand.vmem [shape: f32[1,48], index: 2, kind: input, shape index: {}]
  %s3 = inlined_call_operand.vmem [shape: f32[1,48,48], index: 3, kind: input, shape index: {}]
  %s4 = inlined_call_operand.vmem [shape: f32[1,1,48], index: 4, kind: input, shape index: {}]
  %s5 = inlined_call_operand.vmem [shape: f32[48,9], index: 5, kind: input, shape index: {}]
  %s6 = inlined_call_operand.vmem [shape: f32[1,9], index: 6, kind: input, shape index: {}]
  %s7 = inlined_call_operand.hbm [shape: f32[8,9], index: 7, kind: output, shape index: {}]
  %s8 = sld [smem:[#allocation0]]
  $region42: #{tpu_custom_call.1} parent=0
    _
  %s10 = ssub.s32 1, %s8
  %s11 = scalar_select 0, %s10, %s8
  $region1: #{tpu_custom_call.1} parent=0
    #allocation2 [shape = 'u8[16384]{0}', space=vmem, size = 0x4000, scoped, tag = 'input window, operand 1, single buffered']
    #allocation3 [shape = 's32[1]{0}', space=sflag, size = 0x4, scoped, tag = 'scoped memory for tpu_custom_call.1']
    #allocation4 [shape = 's32[1]{0}', space=sflag, size = 0x4, scoped, tag = 'scoped memory for tpu_custom_call.1']
    #allocation5 [shape = 'u8[4096]{0}', space=vmem, size = 0x1000, scoped, tag = 'output window, operand 0, single buffered']
    %12 = vsyncpa [#allocation3], 0
    %13 = vsyncpa [#allocation4], 0
    // Predicated region
    $region2: #{tpu_custom_call.1} parent=1 // pred_check
      _
    $region3: #{tpu_custom_call.1} parent=1 // pred_check_branch
      %15 = sbr.rel (0) target = $region5
    $region4: #{tpu_custom_call.1} parent=1 // pred_region
      _
    $region5: #{tpu_custom_call.1} parent=1 // pred_fallthru
      _
    // Predicated region
    $region6: #{tpu_custom_call.1} parent=1 // pred_check
      _
    $region7: #{tpu_custom_call.1} parent=1 // pred_check_branch
      %17 = sbr.rel (0) target = $region9
    $region8: #{tpu_custom_call.1} parent=1 // pred_region
      %19 = vsyncadd [#allocation3], 0
      %s20 = sshll.u32 %s1, 4
      %s21 = int_to_ptr.hbm [resolvable:$true] %s20
      %s22 = sshll.u32 [#allocation2], 4
      %s23 = int_to_ptr.vmem [resolvable:$true] %s22
      %28 = dma.hbm_to_vmem [thread:$0]  %s21, 512, %s23, [#allocation3], 128, 128, 8
    $region9: #{tpu_custom_call.1} parent=1 // pred_fallthru
      _
    // Predicated region
    $region10: #{tpu_custom_call.1} parent=1 // pred_check
      _
    $region11: #{tpu_custom_call.1} parent=1 // pred_check_branch
      %30 = sbr.rel (0) target = $region13
    $region12: #{tpu_custom_call.1} parent=1 // pred_region
      _
    $region13: #{tpu_custom_call.1} parent=1 // pred_fallthru
      _
    // Predicated region
    $region14: #{tpu_custom_call.1} parent=1 // pred_check
      _
    $region15: #{tpu_custom_call.1} parent=1 // pred_check_branch
      %32 = sbr.rel (0) target = $region17
    $region16: #{tpu_custom_call.1} parent=1 // pred_region
      _
    $region17: #{tpu_custom_call.1} parent=1 // pred_fallthru
      _
    // Predicated region
    $region18: #{tpu_custom_call.1} parent=1 // pred_check
      _
    $region19: #{tpu_custom_call.1} parent=1 // pred_check_branch
      %34 = sbr.rel (0) target = $region21
    $region20: #{tpu_custom_call.1} parent=1 // pred_region
      _
    $region21: #{tpu_custom_call.1} parent=1 // pred_fallthru
      _
    // Predicated region
    $region22: #{tpu_custom_call.1} parent=1 // pred_check
      _
    $region23: #{tpu_custom_call.1} parent=1 // pred_check_branch
      %36 = sbr.rel (0) target = $region25
    $region24: #{tpu_custom_call.1} parent=1 // pred_region
      _
    $region25: #{tpu_custom_call.1} parent=1 // pred_fallthru
      _
    // Predicated region
    $region26: #{tpu_custom_call.1} parent=1 // pred_check
      _
    $region27: #{tpu_custom_call.1} parent=1 // pred_check_branch
      %38 = sbr.rel (0) target = $region29
    $region28: #{tpu_custom_call.1} parent=1 // pred_region
      _
    $region29: #{tpu_custom_call.1} parent=1 // pred_fallthru
      _
    // Predicated region
    $region30: #{tpu_custom_call.1} parent=1 // pred_check
      _
    $region31: #{tpu_custom_call.1} parent=1 // pred_check_branch
      %40 = sbr.rel (0) target = $region33
    $region32: #{tpu_custom_call.1} parent=1 // pred_region
      %42 = dma.done [#allocation3], 512
    $region33: #{tpu_custom_call.1} parent=1 // pred_fallthru
      _
    %v43 = vld [vmem:[%s0] sm:$0xff]
    %v44 = vld [vmem:[#allocation2] sm:$0xff]
    %v45 = vld [vmem:[#allocation2 + $0x8] sm:$0xff]
    %v46 = vld [vmem:[#allocation2 + $0x10] sm:$0xff]
    %v47 = vld [vmem:[#allocation2 + $0x18] sm:$0xff]
    %v48 = vld [vmem:[%s2] sm:$0x1]
    %v50 = vperm.slane %v48, 0
    %vm52 = vcmask 261120
    %v54 = vsel %vm52, %v43, 0
    %56 = vmatpush.msra.mxu0 0.0
    %57 = vmatpush.msra.mxu0 0.0
    %58 = vmatpush.msra.mxu0 0.0
    %59 = vmatpush.msra.mxu0 0.0
    %60 = vmatpush.msra.mxu0 0.0
    %61 = vmatpush.msra.mxu0 0.0
    %62 = vmatpush.msra.mxu0 0.0
    %63 = vmatpush.msra.mxu0 0.0
    %64 = vmatpush.msra.mxu0 0.0
    %65 = vmatpush.msra.mxu0 0.0
    %66 = vmatpush.msra.mxu0 0.0
    %67 = vmatpush.msra.mxu0 0.0
    %68 = vmatpush.msra.mxu0 %v47
    %69 = vmatpush.msra.mxu0 %v46
    %70 = vmatpush.msra.mxu0 %v45
    %71 = vmatpush.msra.mxu0 %v44
    %72 = vmatmul.f32.gmra.mxu0 %v54
    %v73 = vpop.f32.mrf.mxu0
    %v74 = vadd.f32 %v50, %v73
    %75 = vdwg.mxu0
    %v76 = vmax.f32 %v74, 0.0
    %v77 = vld [vmem:[%s3] sm:$0xff]
    %v78 = vld [vmem:[%s3 + $0x8] sm:$0xff]
    %v79 = vld [vmem:[%s3 + $0x10] sm:$0xff]
    %v80 = vld [vmem:[%s3 + $0x18] sm:$0xff]
    %v81 = vld [vmem:[%s3 + $0x20] sm:$0xff]
    %v82 = vld [vmem:[%s3 + $0x28] sm:$0xff]
    %v83 = vld [vmem:[%s4] sm:$0x1]
    %v85 = vperm.slane %v83, 0
    %vm87 = vcmask 392192
    %v89 = vsel %vm87, %v76, 0
    %91 = vmatpush.msra.mxu0 0.0
    %92 = vmatpush.msra.mxu0 0.0
    %93 = vmatpush.msra.mxu0 0.0
    %94 = vmatpush.msra.mxu0 0.0
    %95 = vmatpush.msra.mxu0 0.0
    %96 = vmatpush.msra.mxu0 0.0
    %97 = vmatpush.msra.mxu0 0.0
    %98 = vmatpush.msra.mxu0 0.0
    %99 = vmatpush.msra.mxu0 0.0
    %100 = vmatpush.msra.mxu0 0.0
    %101 = vmatpush.msra.mxu0 %v82
    %102 = vmatpush.msra.mxu0 %v81
    %103 = vmatpush.msra.mxu0 %v80
    %104 = vmatpush.msra.mxu0 %v79
    %105 = vmatpush.msra.mxu0 %v78
    %106 = vmatpush.msra.mxu0 %v77
    %107 = vmatmul.f32.gmra.mxu0 %v89
    %v108 = vpop.f32.mrf.mxu0
    %v109 = vadd.f32 %v85, %v108
    %110 = vdwg.mxu0
    %v111 = vmax.f32 %v109, 0.0
    %v112 = vld [vmem:[%s5] sm:$0xff]
    %v113 = vld [vmem:[%s5 + $0x8] sm:$0xff]
    %v114 = vld [vmem:[%s5 + $0x10] sm:$0xff]
    %v115 = vld [vmem:[%s5 + $0x18] sm:$0xff]
    %v116 = vld [vmem:[%s5 + $0x20] sm:$0xff]
    %v117 = vld [vmem:[%s5 + $0x28] sm:$0xff]
    %v118 = vld [vmem:[%s6] sm:$0x1]
    %v120 = vperm.slane %v118, 0
    %v123 = vsel %vm87, %v111, 0
    %125 = vmatpush.msra.mxu0 0.0
    %126 = vmatpush.msra.mxu0 0.0
    %127 = vmatpush.msra.mxu0 0.0
    %128 = vmatpush.msra.mxu0 0.0
    %129 = vmatpush.msra.mxu0 0.0
    %130 = vmatpush.msra.mxu0 0.0
    %131 = vmatpush.msra.mxu0 0.0
    %132 = vmatpush.msra.mxu0 0.0
    %133 = vmatpush.msra.mxu0 0.0
    %134 = vmatpush.msra.mxu0 0.0
    %135 = vmatpush.msra.mxu0 %v117
    %136 = vmatpush.msra.mxu0 %v116
    %137 = vmatpush.msra.mxu0 %v115
    %138 = vmatpush.msra.mxu0 %v114
    %139 = vmatpush.msra.mxu0 %v113
    %140 = vmatpush.msra.mxu0 %v112
    %141 = vmatmul.f32.gmra.mxu0 %v123
    %v142 = vpop.f32.mrf.mxu0
    %v143 = vadd.f32 %v120, %v142
    %144 = vdwg.mxu0
    %vm145 = vcmask 72704
    %146 = vst.msk [vmem:[#allocation5] sm:$0xff] %vm145, %v143
    // Predicated region
    $region34: #{tpu_custom_call.1} parent=1 // pred_check
      _
    $region35: #{tpu_custom_call.1} parent=1 // pred_check_branch
      %148 = sbr.rel (0) target = $region37
    $region36: #{tpu_custom_call.1} parent=1 // pred_region
      %150 = vsyncadd [#allocation4], 0
      %s152 = sshll.u32 [#allocation5], 4
      %s153 = int_to_ptr.vmem [resolvable:$true] %s152
      %s154 = sshll.u32 %s7, 4
      %s155 = int_to_ptr.hbm [resolvable:$true] %s154
      %157 = dma.vmem_to_hbm [thread:$0]  %s153, 128, %s155, [#allocation4]
    $region37: #{tpu_custom_call.1} parent=1 // pred_fallthru
      _
    // Predicated region
    $region38: #{tpu_custom_call.1} parent=1 // pred_check
      _
    $region39: #{tpu_custom_call.1} parent=1 // pred_check_branch
      %159 = sbr.rel (0) target = $region41
    $region40: #{tpu_custom_call.1} parent=1 // pred_region
      %161 = dma.done [#allocation4], 128
    $region41: #{tpu_custom_call.1} parent=1 // pred_fallthru
      _
    %162 = vsyncpa [#allocation3], 1
    %163 = vsyncpa [#allocation4], 1

</llo_original>
